<compile_context>
chip_gen: v5e
topology: v5e:2x2
jax: 0.10.0
libtpu: 0.0.40
codegen_flags: <defaults>
</compile_context>

<pallas_src>
import functools

import jax
import jax.numpy as jnp
from jax.experimental import pallas as pl
from jax.experimental.pallas import tpu as pltpu

_LANE = 128
_SUBLANE = 8


def _round_up(x: int, m: int) -> int:
    return ((x + m - 1) // m) * m


def mf_kernel(a_ref, b_ref, out_ref):
    # a_ref/b_ref: (DP, TB) f32 — batch on lanes, (embedding + bias) rows on
    # sublanes.  out_ref: (1, TB) lane-dense ratings.
    prod = a_ref[...] * b_ref[...]                        # VPU, full lane use
    out_ref[...] = jnp.sum(prod, axis=0, keepdims=True)   # sublane reduce


@functools.partial(jax.jit, static_argnames=("tb",))
def mfnet_forward(user_emb_table, item_emb_table,
                  user_bias_table, item_bias_table,
                  user_idx, item_idx, *, tb=2048):
    """Pallas implementation of MFNet.forward.

    Returns a (B,) float32 array of predicted ratings, matching
    torch.sum(user_emb * item_emb, dim=1) + user_bias.squeeze() + item_bias.squeeze().
    """
    # Embedding lookups (XLA glue).
    ue = jnp.take(user_emb_table, user_idx, axis=0).astype(jnp.float32)   # (B, D)
    ie = jnp.take(item_emb_table, item_idx, axis=0).astype(jnp.float32)   # (B, D)
    ub = jnp.take(user_bias_table, user_idx, axis=0).astype(jnp.float32)  # (B, 1)
    ib = jnp.take(item_bias_table, item_idx, axis=0).astype(jnp.float32)  # (B, 1)

    B, D = ue.shape

    # Fold both biases into a single extra row so the kernel streams only two
    # operands:  a = [ue ; 1],  b = [ie ; ub+ib]  =>  sum(a*b, rows) == rating.
    ones = jnp.ones((B, 1), jnp.float32)
    a = jnp.concatenate([ue, ones], axis=1)       # (B, D+1)
    b = jnp.concatenate([ie, ub + ib], axis=1)    # (B, D+1)

    # Transpose so batch sits on lanes; zero-pad rows to a sublane multiple and
    # batch to a lane/tile multiple.  Zero padding is harmless: padded sublanes
    # add 0 to each per-lane reduce, padded lanes are sliced off at the end.
    rows = D + 1
    dp = _round_up(rows, _SUBLANE)
    tb = max(_LANE, (min(tb, _round_up(B, _LANE)) // _LANE) * _LANE)
    bp = _round_up(B, tb)

    a_t = jnp.pad(a.T, ((0, dp - rows), (0, bp - B)))   # (dp, bp)
    b_t = jnp.pad(b.T, ((0, dp - rows), (0, bp - B)))   # (dp, bp)

    grid = (bp // tb,)

    out = pl.pallas_call(
        mf_kernel,
        out_shape=jax.ShapeDtypeStruct((1, bp), jnp.float32),
        grid_spec=pltpu.PrefetchScalarGridSpec(
            num_scalar_prefetch=0,
            grid=grid,
            in_specs=[
                pl.BlockSpec((dp, tb), lambda i: (0, i)),
                pl.BlockSpec((dp, tb), lambda i: (0, i)),
            ],
            out_specs=pl.BlockSpec((1, tb), lambda i: (0, i)),
        ),
        compiler_params=pltpu.CompilerParams(
            dimension_semantics=("parallel",)),
    )(a_t, b_t)

    return out[0, :B]   # (B,) — matches the PyTorch module's output shape


if __name__ == "__main__":
    # Small deterministic setup consistent with MFNet.__init__.
    num_users = 64
    num_items = 128
    embedding_size = 32
    batch = 16

    key = jax.random.PRNGKey(0)
    k_ue, k_ie, k_ub, k_ib, k_u, k_i = jax.random.split(key, 6)

    # nn.Embedding default init ~ N(0, 1).
    user_emb_table = jax.random.normal(k_ue, (num_users, embedding_size), jnp.float32)
    item_emb_table = jax.random.normal(k_ie, (num_items, embedding_size), jnp.float32)
    user_bias_table = jax.random.normal(k_ub, (num_users, 1), jnp.float32)
    item_bias_table = jax.random.normal(k_ib, (num_items, 1), jnp.float32)

    user_idx = jax.random.randint(k_u, (batch,), 0, num_users, jnp.int32)
    item_idx = jax.random.randint(k_i, (batch,), 0, num_items, jnp.int32)

    rating = mfnet_forward(user_emb_table, item_emb_table,
                           user_bias_table, item_bias_table,
                           user_idx, item_idx)
    rating = jax.block_until_ready(rating)

    # Pure-JAX reference for correctness.
    ue = user_emb_table[user_idx]
    ie = item_emb_table[item_idx]
    ref = (jnp.sum(ue * ie, axis=1)
           + user_bias_table[user_idx, 0]
           + item_bias_table[item_idx, 0])
    assert rating.shape == (batch,), rating.shape
    assert jnp.allclose(rating, ref, atol=1e-5, rtol=1e-5), (rating, ref)

    print("KERNEL_OK")
</pallas_src>

<mosaic_0001>
module attributes {stable_mosaic.version = 11 : i64} {
  func.func @mf_kernel(%arg0: i32, %arg1: memref<40x128xf32, #tpu.memory_space<vmem>>, %arg2: memref<40x128xf32, #tpu.memory_space<vmem>>, %arg3: memref<1x128xf32, #tpu.memory_space<vmem>>) attributes {dimension_semantics = [#tpu.dimension_semantics<parallel>], iteration_bounds = array<i64: 1>, scalar_prefetch = 0 : i64, scratch_operands = 0 : i64, tpu.core_type = #tpu.core_type<tc>, window_params = [{transform_indices = @transform_0, window_bounds = array<i64: 40, 128>}, {transform_indices = @transform_1, window_bounds = array<i64: 40, 128>}, {transform_indices = @transform_2, window_bounds = array<i64: 1, 128>}]} {
    %c0 = arith.constant 0 : index
    %c0_0 = arith.constant 0 : index
    %0 = vector.load %arg1[%c0, %c0_0] : memref<40x128xf32, #tpu.memory_space<vmem>>, vector<40x128xf32>
    %c0_1 = arith.constant 0 : index
    %c0_2 = arith.constant 0 : index
    %1 = vector.load %arg2[%c0_1, %c0_2] : memref<40x128xf32, #tpu.memory_space<vmem>>, vector<40x128xf32>
    %2 = arith.mulf %0, %1 : vector<40x128xf32>
    %cst = arith.constant dense<0.000000e+00> : vector<128xf32>
    %3 = vector.multi_reduction <add>, %2, %cst [0] : vector<40x128xf32> to vector<128xf32>
    %4 = vector.shape_cast %3 : vector<128xf32> to vector<1x128xf32>
    %c0_3 = arith.constant 0 : index
    %c0_4 = arith.constant 0 : index
    %5 = vector.load %arg3[%c0_3, %c0_4] : memref<1x128xf32, #tpu.memory_space<vmem>>, vector<1x128xf32>
    tpu.vector_store %arg3[%c0_3, %c0_4], %4 {strides = array<i32>} : memref<1x128xf32, #tpu.memory_space<vmem>>, vector<1x128xf32>,
    return
  }
  func.func @transform_0(%arg0: i32) -> (i32, i32) {
    %c0_i32 = arith.constant 0 : i32
    %c0_i32_0 = arith.constant 0 : i32
    return %c0_i32, %arg0 : i32, i32
  }
  func.func @transform_1(%arg0: i32) -> (i32, i32) {
    %c0_i32 = arith.constant 0 : i32
    %c0_i32_0 = arith.constant 0 : i32
    return %c0_i32, %arg0 : i32, i32
  }
  func.func @transform_2(%arg0: i32) -> (i32, i32) {
    %c0_i32 = arith.constant 0 : i32
    %c0_i32_0 = arith.constant 0 : i32
    return %c0_i32, %arg0 : i32, i32
  }
}

</mosaic_0001>

<llo_original>
// kernel: mfnet_forward.1
$region0: #{mfnet_forward.1}
  #allocation0 [shape = 'u32[]', space=smem, size = 0x4, offset = 0x4, fixed_abs, tag = 'smem constant byte address 0x4 - core index']
  #allocation1 [shape = 'u32[72,128]{1,0:T(1,128)}', space=vmem, size = 0x9000, scoped, tag = 'internal scratch']
  %s0 = inlined_call_operand.vmem [shape: f32[40,128], index: 0, kind: input, shape index: {}]
  %s1 = inlined_call_operand.vmem [shape: f32[40,128], index: 1, kind: input, shape index: {}]
  %s2 = inlined_call_operand.vmem [shape: f32[1,128], index: 2, kind: output, shape index: {}]
  %s3 = sld [smem:[#allocation0]]
  $region18: #{mfnet_forward.1} parent=0
    _
  %s5 = ssub.s32 1, %s3
  %s6 = scalar_select 0, %s5, %s3
  // Predicated region
  $region2: #{mfnet_forward.1} parent=0 // pred_check
    _
  $region3: #{mfnet_forward.1} parent=0 // pred_check_branch
    %8 = sbr.rel (0) target = $region5
  $region4: #{mfnet_forward.1} parent=0 // pred_region
    _
  $region5: #{mfnet_forward.1} parent=0 // pred_fallthru
    _
  // Predicated region
  $region6: #{mfnet_forward.1} parent=0 // pred_check
    _
  $region7: #{mfnet_forward.1} parent=0 // pred_check_branch
    %10 = sbr.rel (0) target = $region9
  $region8: #{mfnet_forward.1} parent=0 // pred_region
    _
  $region9: #{mfnet_forward.1} parent=0 // pred_fallthru
    _
  %v11 = vld [vmem:[%s0] sm:$0xff]
  %v12 = vld [vmem:[%s0 + $0x8] sm:$0xff]
  %v13 = vld [vmem:[%s0 + $0x10] sm:$0xff]
  %v14 = vld [vmem:[%s0 + $0x18] sm:$0xff]
  %v15 = vld [vmem:[%s0 + $0x20] sm:$0xff]
  %v16 = vld [vmem:[%s1] sm:$0xff]
  %v17 = vld [vmem:[%s1 + $0x8] sm:$0xff]
  %v18 = vld [vmem:[%s1 + $0x10] sm:$0xff]
  %v19 = vld [vmem:[%s1 + $0x18] sm:$0xff]
  %v20 = vld [vmem:[%s1 + $0x20] sm:$0xff]
  %v21 = vmul.f32 %v11, %v16
  %v22 = vmul.f32 %v12, %v17
  %v23 = vmul.f32 %v13, %v18
  %v24 = vmul.f32 %v14, %v19
  %v25 = vmul.f32 %v15, %v20
  %v26 = vadd.f32 %v21, %v22
  %v27 = vadd.f32 %v26, %v23
  %v28 = vadd.f32 %v27, %v24
  %v29 = vadd.f32 %v28, %v25
  %v30 = vrot.slane %v29, 4
  %v31 = vadd.f32 %v29, %v30
  %v32 = vrot.slane %v31, 2
  %v33 = vadd.f32 %v31, %v32
  %v34 = vrot.slane %v33, 1
  %v35 = vadd.f32 %v33, %v34
  %36 = vst [vmem:[%s2] sm:$0x1] %v35
  // Predicated region
  $region10: #{mfnet_forward.1} parent=0 // pred_check
    _
  $region11: #{mfnet_forward.1} parent=0 // pred_check_branch
    %38 = sbr.rel (0) target = $region13
  $region12: #{mfnet_forward.1} parent=0 // pred_region
    _
  $region13: #{mfnet_forward.1} parent=0 // pred_fallthru
    _
  // Predicated region
  $region14: #{mfnet_forward.1} parent=0 // pred_check
    _
  $region15: #{mfnet_forward.1} parent=0 // pred_check_branch
    %40 = sbr.rel (0) target = $region17
  $region16: #{mfnet_forward.1} parent=0 // pred_region
    _
  $region17: #{mfnet_forward.1} parent=0 // pred_fallthru
    _

</llo_original>
